<compile_context>
chip_gen: v5e
topology: v5e:2x2
jax: 0.10.0
libtpu: 0.0.40
codegen_flags: <defaults>
</compile_context>

<pallas_src>
import functools

import jax
import jax.numpy as jnp
from jax import lax
from jax.experimental import pallas as pl
from jax.experimental.pallas import tpu as pltpu


def _vmem_budget_bytes():
    """Generation-aware scoped-VMEM budget: half of physical, capped at 64 MiB."""
    try:
        cap = pltpu.get_tpu_info().vmem_capacity_bytes
        return int(min(cap // 2, 64 * 1024 * 1024))
    except Exception:
        return 32 * 1024 * 1024            # safe on every generation


def _broadcast_pe(pe_tile, batch):
    # pe_tile: (ts, D) -> (ts, B*D).  x is viewed as (S, B*D) where lanes
    # [b*D:(b+1)*D] of row s hold x[s, b, :], so a lane-axis concat of `batch`
    # copies of pe lines up exactly (cheap, and avoids B x extra pe HBM traffic).
    if batch == 1:
        return pe_tile
    return jnp.concatenate([pe_tile] * batch, axis=-1)


def _mix_u32(x):
    # lowbias32 integer mixer — good avalanche, only uint32 mul/xor/shift.
    x = x ^ (x >> 16)
    x = x * jnp.uint32(0x7FEB352D)
    x = x ^ (x >> 15)
    x = x * jnp.uint32(0x846CA68B)
    x = x ^ (x >> 16)
    return x


def _dropout_bits(seed_u32, shape, row_offset_u32):
    # Counter-based bits: hash(global element index, seed).  Global row index
    # folds in the tile offset -> mask identical for any tiling / grid order.
    rows = lax.broadcasted_iota(jnp.int32, shape, 0).astype(jnp.uint32) + row_offset_u32
    cols = lax.broadcasted_iota(jnp.int32, shape, 1).astype(jnp.uint32)
    x = rows * jnp.uint32(0x9E3779B1) + cols
    x = x ^ (seed_u32 * jnp.uint32(0x85EBCA77) + jnp.uint32(0xC2B2AE35))
    return _mix_u32(x)


def _pe_add_kernel(x_ref, pe_ref, o_ref, *, batch):
    # Eval path: dropout is the identity -> pure broadcast add.
    o_ref[...] = (x_ref[...] + _broadcast_pe(pe_ref[...], batch)).astype(o_ref.dtype)


def _pe_add_dropout_kernel(seed_ref, x_ref, pe_ref, o_ref, *, batch, rate, tile_rows):
    # Training path: add positional encoding, then inverted dropout.
    # TODO(synk): the dropout mask comes from a counter-based hash, not torch's
    # RNG — keep probability / scaling semantics match nn.Dropout, exact bits don't.
    y = x_ref[...] + _broadcast_pe(pe_ref[...], batch)
    seed_u32 = seed_ref[0].astype(jnp.uint32)
    row_off = (pl.program_id(0) * tile_rows).astype(jnp.uint32)
    bits = _dropout_bits(seed_u32, y.shape, row_off)
    # Integer threshold on the low 23 bits: keep with prob (1 - rate).
    thresh = jnp.uint32(int(round(rate * (1 << 23))))
    keep = (bits & jnp.uint32(0x7FFFFF)) >= thresh
    scale = 1.0 / (1.0 - rate)
    o_ref[...] = jnp.where(keep, y * scale, 0.0).astype(o_ref.dtype)


@functools.partial(jax.jit, static_argnames=("dropout_p", "training", "force_pallas"))
def learnable_positional_encoding(x, pe, seed, *, dropout_p=0.1, training=False,
                                  force_pallas=False):
    """Forward of LearnablePositionalEncoding.

    x:    (S, B, D)       [sequence length, batch size, embed dim]
    pe:   (max_len, 1, D) learnable parameter
    seed: int32[1]        dropout seed (vary per training step for fresh masks)
    """
    S, B, D = x.shape
    out_dtype = x.dtype

    if training and dropout_p >= 1.0:
        # Degenerate case: nn.Dropout(p=1) zeroes everything.
        return jnp.zeros_like(x)

    apply_dropout = bool(training) and dropout_p > 0.0
    itemsize = jnp.dtype(x.dtype).itemsize
    total_bytes = S * B * D * itemsize

    if (not force_pallas) and total_bytes < (256 * 1024):
        # Tiny inputs: kernel launch + pipeline setup dominates; fused XLA path.
        y = x + pe[:S, :].astype(x.dtype)
        if apply_dropout:
            key = jax.random.fold_in(jax.random.PRNGKey(0), seed[0])
            keep = jax.random.bernoulli(key, 1.0 - dropout_p, y.shape)
            y = jnp.where(keep, y / (1.0 - dropout_p), 0.0)
        return y.astype(out_dtype)

    pe_s = pe[:S, 0, :].astype(x.dtype)            # (S, D) glue slice in JAX
    BD = B * D
    x2 = x.reshape(S, BD)                          # contiguous -> free reshape

    # Sequence-axis tile from the generation-aware VMEM budget.  No wrapper
    # padding: Pallas masks the partial last block.
    vmem_budget = _vmem_budget_bytes()
    row_bytes = BD * itemsize
    sub = max(8, 32 // itemsize)                   # sublane pack: 8 f32 / 16 bf16 / 32 i8
    ts = max(1, (vmem_budget // 10) // row_bytes)  # ~3-6 MiB per x block
    if ts >= S:
        ts = S                                     # single block == full extent
    else:
        ts = max(sub, (ts // sub) * sub)
    # TODO(synk): if even `sub` rows exceed the VMEM budget (enormous B*D), a
    # second lane-axis grid dimension tiling BD in multiples of 128 is needed.
    n_tiles = pl.cdiv(S, ts)

    out_shape = jax.ShapeDtypeStruct((S, BD), out_dtype)
    compiler_params = pltpu.CompilerParams(
        # Megacore-shardable; on v7x verify both TCs are used (switch to
        # pltpu.CORE_PARALLEL if a profile shows one TC doing all tiles).
        dimension_semantics=("parallel",),
        vmem_limit_bytes=vmem_budget,
    )

    if not apply_dropout:
        out2 = pl.pallas_call(
            functools.partial(_pe_add_kernel, batch=B),
            out_shape=out_shape,
            grid_spec=pltpu.PrefetchScalarGridSpec(
                num_scalar_prefetch=0,
                grid=(n_tiles,),
                in_specs=[
                    pl.BlockSpec((ts, BD), lambda i: (i, 0)),
                    pl.BlockSpec((ts, D), lambda i: (i, 0)),
                ],
                out_specs=pl.BlockSpec((ts, BD), lambda i: (i, 0)),
            ),
            compiler_params=compiler_params,
        )(x2, pe_s)
    else:
        out2 = pl.pallas_call(
            functools.partial(_pe_add_dropout_kernel, batch=B,
                              rate=float(dropout_p), tile_rows=ts),
            out_shape=out_shape,
            grid_spec=pltpu.PrefetchScalarGridSpec(
                num_scalar_prefetch=1,
                grid=(n_tiles,),
                in_specs=[
                    pl.BlockSpec((ts, BD), lambda i, s: (i, 0)),
                    pl.BlockSpec((ts, D), lambda i, s: (i, 0)),
                ],
                out_specs=pl.BlockSpec((ts, BD), lambda i, s: (i, 0)),
            ),
            compiler_params=compiler_params,
        )(seed, x2, pe_s)

    return out2.reshape(S, B, D)


if __name__ == "__main__":
    d_model = 128
    max_len = 1024
    seq_len = 8
    batch = 2
    p = 0.1

    key = jax.random.PRNGKey(0)
    k_pe, k_x = jax.random.split(key)

    # nn.init.uniform_(self.pe, -0.02, 0.02), shape (max_len, 1, d_model)
    pe = jax.random.uniform(
        k_pe, (max_len, 1, d_model), dtype=jnp.float32, minval=-0.02, maxval=0.02
    )
    # x: [sequence length, batch size, embed dim]
    x = jax.random.normal(k_x, (seq_len, batch, d_model), dtype=jnp.float32)
    seed = jnp.array([0], dtype=jnp.int32)

    ref = x + pe[:seq_len, :]                       # broadcast (S,1,D) over batch

    # ---- Eval mode (module.eval()): dropout is the identity -----------------
    out_eval = jax.block_until_ready(
        learnable_positional_encoding(x, pe, seed, dropout_p=p, training=False,
                                      force_pallas=True))
    assert out_eval.shape == (seq_len, batch, d_model)
    assert out_eval.dtype == x.dtype
    assert jnp.allclose(out_eval, ref, atol=1e-6, rtol=1e-6)

    # Small-input XLA fast path must agree exactly with the Pallas path.
    out_fast = jax.block_until_ready(
        learnable_positional_encoding(x, pe, seed, dropout_p=p, training=False))
    assert jnp.allclose(out_fast, ref, atol=1e-6, rtol=1e-6)

    # ---- Training mode: add + inverted dropout ------------------------------
    # Hash-based bits differ from torch's RNG, so check semantics: every
    # element is either exactly 0 (dropped) or (x+pe)/(1-p) (kept), and the
    # keep fraction is close to 1-p.
    out_tr = jax.block_until_ready(
        learnable_positional_encoding(x, pe, seed, dropout_p=p, training=True,
                                      force_pallas=True))
    assert out_tr.shape == (seq_len, batch, d_model)
    scaled = ref / (1.0 - p)
    dropped = out_tr == 0.0
    kept_ok = jnp.isclose(out_tr, scaled, atol=1e-5, rtol=1e-5)
    assert bool(jnp.all(dropped | kept_ok))
    keep_frac = 1.0 - float(jnp.mean(dropped.astype(jnp.float32)))
    assert abs(keep_frac - (1.0 - p)) < 0.08

    print("KERNEL_OK")
</pallas_src>

<mosaic_0001>
module attributes {stable_mosaic.version = 11 : i64} {
  func.func @_pe_add_kernel(%arg0: i32, %arg1: memref<8x256xf32, #tpu.memory_space<vmem>>, %arg2: memref<8x128xf32, #tpu.memory_space<vmem>>, %arg3: memref<8x256xf32, #tpu.memory_space<vmem>>) attributes {dimension_semantics = [#tpu.dimension_semantics<parallel>], iteration_bounds = array<i64: 1>, scalar_prefetch = 0 : i64, scratch_operands = 0 : i64, tpu.core_type = #tpu.core_type<tc>, window_params = [{transform_indices = @transform_0, window_bounds = array<i64: 8, 256>}, {transform_indices = @transform_1, window_bounds = array<i64: 8, 128>}, {transform_indices = @transform_2, window_bounds = array<i64: 8, 256>}]} {
    %c0 = arith.constant 0 : index
    %c0_0 = arith.constant 0 : index
    %0 = vector.load %arg1[%c0, %c0_0] : memref<8x256xf32, #tpu.memory_space<vmem>>, vector<8x256xf32>
    %c0_1 = arith.constant 0 : index
    %c0_2 = arith.constant 0 : index
    %1 = vector.load %arg2[%c0_1, %c0_2] : memref<8x128xf32, #tpu.memory_space<vmem>>, vector<8x128xf32>
    %2 = tpu.concatenate %1, %1 in 1 : vector<8x128xf32>, vector<8x128xf32> -> vector<8x256xf32>
    %3 = arith.addf %0, %2 : vector<8x256xf32>
    %c0_3 = arith.constant 0 : index
    %c0_4 = arith.constant 0 : index
    %4 = vector.load %arg3[%c0_3, %c0_4] : memref<8x256xf32, #tpu.memory_space<vmem>>, vector<8x256xf32>
    tpu.vector_store %arg3[%c0_3, %c0_4], %3 {strides = array<i32>} : memref<8x256xf32, #tpu.memory_space<vmem>>, vector<8x256xf32>,
    return
  }
  func.func @transform_0(%arg0: i32) -> (i32, i32) {
    %c0_i32 = arith.constant 0 : i32
    %c0_i32_0 = arith.constant 0 : i32
    return %arg0, %c0_i32 : i32, i32
  }
  func.func @transform_1(%arg0: i32) -> (i32, i32) {
    %c0_i32 = arith.constant 0 : i32
    %c0_i32_0 = arith.constant 0 : i32
    return %arg0, %c0_i32 : i32, i32
  }
  func.func @transform_2(%arg0: i32) -> (i32, i32) {
    %c0_i32 = arith.constant 0 : i32
    %c0_i32_0 = arith.constant 0 : i32
    return %arg0, %c0_i32 : i32, i32
  }
}

</mosaic_0001>

<llo_original>
// kernel: learnable_positional_encoding.1
$region0: #{learnable_positional_encoding.1}
  #allocation0 [shape = 'u32[]', space=smem, size = 0x4, offset = 0x4, fixed_abs, tag = 'smem constant byte address 0x4 - core index']
  #allocation1 [shape = 'u32[72,128]{1,0:T(1,128)}', space=vmem, size = 0x9000, scoped, tag = 'internal scratch']
  %s0 = inlined_call_operand.vmem [shape: f32[8,256], index: 0, kind: input, shape index: {}]
  %s1 = inlined_call_operand.vmem [shape: f32[8,128], index: 1, kind: input, shape index: {}]
  %s2 = inlined_call_operand.vmem [shape: f32[8,256], index: 2, kind: output, shape index: {}]
  %s3 = sld [smem:[#allocation0]]
  $region18: #{learnable_positional_encoding.1} parent=0
    _
  %s5 = ssub.s32 1, %s3
  %s6 = scalar_select 0, %s5, %s3
  // Predicated region
  $region2: #{learnable_positional_encoding.1} parent=0 // pred_check
    _
  $region3: #{learnable_positional_encoding.1} parent=0 // pred_check_branch
    %8 = sbr.rel (0) target = $region5
  $region4: #{learnable_positional_encoding.1} parent=0 // pred_region
    _
  $region5: #{learnable_positional_encoding.1} parent=0 // pred_fallthru
    _
  // Predicated region
  $region6: #{learnable_positional_encoding.1} parent=0 // pred_check
    _
  $region7: #{learnable_positional_encoding.1} parent=0 // pred_check_branch
    %10 = sbr.rel (0) target = $region9
  $region8: #{learnable_positional_encoding.1} parent=0 // pred_region
    _
  $region9: #{learnable_positional_encoding.1} parent=0 // pred_fallthru
    _
  %v11 = vld [vmem:[%s0] sm:$0xff]
  %v12 = vld [vmem:[%s0 + $0x8] sm:$0xff]
  %v13 = vld [vmem:[%s1] sm:$0xff]
  %v14 = vadd.f32 %v11, %v13
  %v15 = vadd.f32 %v12, %v13
  %16 = vst [vmem:[%s2] sm:$0xff] %v14
  %17 = vst [vmem:[%s2 + $0x8] sm:$0xff] %v15
  // Predicated region
  $region10: #{learnable_positional_encoding.1} parent=0 // pred_check
    _
  $region11: #{learnable_positional_encoding.1} parent=0 // pred_check_branch
    %19 = sbr.rel (0) target = $region13
  $region12: #{learnable_positional_encoding.1} parent=0 // pred_region
    _
  $region13: #{learnable_positional_encoding.1} parent=0 // pred_fallthru
    _
  // Predicated region
  $region14: #{learnable_positional_encoding.1} parent=0 // pred_check
    _
  $region15: #{learnable_positional_encoding.1} parent=0 // pred_check_branch
    %21 = sbr.rel (0) target = $region17
  $region16: #{learnable_positional_encoding.1} parent=0 // pred_region
    _
  $region17: #{learnable_positional_encoding.1} parent=0 // pred_fallthru
    _

</llo_original>
